<compile_context>
chip_gen: v7x
topology: tpu7x:2x2x1
jax: 0.10.0
libtpu: 0.0.40
codegen_flags: <defaults>
</compile_context>

<pallas_src>
import functools

import jax
import jax.numpy as jnp
from jax.experimental import pallas as pl
from jax.experimental.pallas import tpu as pltpu

_LANE = 128
_SUB = 8
_TILE_BYTES = 1 << 20   # ~1 MiB per input tile (measured HBM-roofline sweet spot)


def _cdiv(a, b):
    return -(-a // b)


def _round_up(a, m):
    return _cdiv(a, m) * m


def _num_tensorcores():
    """TensorCores per device: 2 on v7x, 1 on v5e/v6e. Safe default is 1."""
    try:
        kind = jax.devices()[0].device_kind.lower()
    except Exception:
        return 1
    return 2 if ("v7" in kind or "tpu7" in kind) else 1


def _hinge_sum_kernel(x_ref, t_ref, o_ref, *, y_infimum, rows_valid,
                      block_rows, blocks_per_core):
    """Accumulate hinge-loss partial sums into a resident (1, 8, 128) f32 block."""
    c = pl.program_id(0)   # core / partial index
    i = pl.program_id(1)   # reduction step

    @pl.when(i == 0)
    def _():
        o_ref[...] = jnp.zeros_like(o_ref)

    x = x_ref[...].astype(jnp.float32)        # (block_rows, 128), native -> f32 on VPU
    t = t_ref[...].astype(jnp.float32)
    if y_infimum == 0:
        t = t * 2.0 - 1.0
    loss = jnp.maximum(0.0, 1.0 - t * x)

    block_start = (c * blocks_per_core + i) * block_rows
    rows_here = rows_valid - block_start       # rows of this block holding real data

    # Full blocks: mask-free fast path (pure VPU adds, reduce only the leading axis).
    @pl.when(rows_here >= block_rows)
    def _():
        o_ref[...] += jnp.sum(loss.reshape(block_rows // _SUB, _SUB, _LANE),
                              axis=0, keepdims=True)

    # Final (partial / fully out-of-range) block only: zero the rows Pallas padded
    # with garbage.  Select, not multiply, so NaN/Inf garbage cannot leak through.
    @pl.when(rows_here < block_rows)
    def _():
        row = jax.lax.broadcasted_iota(jnp.int32, (block_rows, _LANE), 0)
        masked = jnp.where(row < rows_here, loss, 0.0)
        o_ref[...] += jnp.sum(masked.reshape(block_rows // _SUB, _SUB, _LANE),
                              axis=0, keepdims=True)


def _hinge_elem_kernel(x_ref, t_ref, o_ref, *, y_infimum):
    x = x_ref[...].astype(jnp.float32)
    t = t_ref[...].astype(jnp.float32)
    if y_infimum == 0:
        t = t * 2.0 - 1.0
    o_ref[...] = jnp.maximum(0.0, 1.0 - t * x).astype(o_ref.dtype)


def binary_hinge_loss(inp, target, *, y_infimum=0, reduction="mean",
                      block_rows=None):
    """Pallas implementation of BinaryHingeLoss.forward."""
    assert y_infimum in (-1, 0)
    assert inp.shape == target.shape
    if reduction not in ("none", "mean", "sum"):
        raise ValueError(f"unknown reduction: {reduction}")

    orig_shape = inp.shape
    out_dtype = jnp.result_type(inp.dtype, target.dtype)
    n = inp.size

    if n == 0:  # degenerate input
        if reduction == "none":
            return jnp.zeros(orig_shape, out_dtype)
        if reduction == "sum":
            return jnp.zeros((), out_dtype)
        return jnp.full((), jnp.nan, out_dtype)   # mean of empty -> nan (torch semantics)

    x = inp.reshape(-1)        # native dtype; the f32 cast happens inside the kernel
    t = target.reshape(-1)

    rows = _cdiv(n, _LANE)
    rem = rows * _LANE - n     # < 128
    if rem:
        # Tiny tail pad (<128 elements, only when n isn't lane-aligned).  Pad value 1
        # makes the hinge loss of the padded elements exactly 0 -> no lane masking.
        x = jnp.pad(x, (0, rem), constant_values=1)
        t = jnp.pad(t, (0, rem), constant_values=1)
    x2 = x.reshape(rows, _LANE)
    t2 = t.reshape(rows, _LANE)

    item_max = max(inp.dtype.itemsize, target.dtype.itemsize)
    item_min = min(inp.dtype.itemsize, target.dtype.itemsize)
    io_bytes = n * (inp.dtype.itemsize + target.dtype.itemsize)

    pack = _SUB * max(1, 4 // max(1, item_min))      # sublane packing: 8 f32, 16 bf16, 32 i8
    if block_rows is None:
        br = max(pack, (_TILE_BYTES // (_LANE * item_max)) // pack * pack)
    else:
        br = _round_up(block_rows, pack)
    br = min(br, _round_up(rows, pack))              # don't over-tile small inputs

    if reduction == "none":
        tile = pl.BlockSpec((br, _LANE), lambda i: (i, 0))
        out2 = pl.pallas_call(
            functools.partial(_hinge_elem_kernel, y_infimum=y_infimum),
            out_shape=jax.ShapeDtypeStruct((rows, _LANE), out_dtype),
            grid_spec=pltpu.PrefetchScalarGridSpec(
                num_scalar_prefetch=0,
                grid=(_cdiv(rows, br),),
                in_specs=[tile, tile],
                out_specs=tile,
            ),
            compiler_params=pltpu.CompilerParams(
                dimension_semantics=(pltpu.PARALLEL,),
                vmem_limit_bytes=32 * 1024 * 1024),
            cost_estimate=pl.CostEstimate(
                flops=5 * n, transcendentals=0,
                bytes_accessed=io_bytes + n * jnp.dtype(out_dtype).itemsize),
        )(x2, t2)
        out_flat = out2.reshape(-1)
        if rem:
            out_flat = out_flat[:n]                  # only when a tail pad was added
        return out_flat.reshape(orig_shape)

    # reduction in ('mean', 'sum')
    num_blocks = _cdiv(rows, br)
    num_cores = 2 if (_num_tensorcores() == 2 and num_blocks >= 2) else 1
    blocks_per_core = _cdiv(num_blocks, num_cores)

    if num_cores == 2:
        # v7x: guarantee one partial per TensorCore.
        dims = (pltpu.CORE_PARALLEL, pltpu.ARBITRARY)
    else:
        # v5e/v6e: leading axis has size 1 -> single clean reduction loop.
        dims = (pltpu.ARBITRARY, pltpu.ARBITRARY)

    in_tile = pl.BlockSpec((br, _LANE),
                           lambda c, i: (c * blocks_per_core + i, 0))

    partials = pl.pallas_call(
        functools.partial(_hinge_sum_kernel, y_infimum=y_infimum,
                          rows_valid=rows, block_rows=br,
                          blocks_per_core=blocks_per_core),
        out_shape=jax.ShapeDtypeStruct((num_cores, _SUB, _LANE), jnp.float32),
        grid_spec=pltpu.PrefetchScalarGridSpec(
            num_scalar_prefetch=0,
            grid=(num_cores, blocks_per_core),
            in_specs=[in_tile, in_tile],
            out_specs=pl.BlockSpec((1, _SUB, _LANE), lambda c, i: (c, 0, 0)),
        ),
        compiler_params=pltpu.CompilerParams(
            dimension_semantics=dims,
            vmem_limit_bytes=32 * 1024 * 1024),
        cost_estimate=pl.CostEstimate(
            flops=5 * n, transcendentals=0, bytes_accessed=io_bytes),
    )(x2, t2)

    total = jnp.sum(partials)                        # <= 2048 f32 values: tiny XLA reduce
    if reduction == "sum":
        return total.astype(out_dtype)
    return (total / jnp.float32(n)).astype(out_dtype)


def _reference(inp, target, y_infimum, reduction):
    x = inp.astype(jnp.float32)
    t = target.astype(jnp.float32)
    if y_infimum == 0:
        t = t * 2.0 - 1.0
    loss = jnp.maximum(jnp.zeros_like(t), 1.0 - t * x)
    if reduction == "none":
        return loss
    if reduction == "mean":
        return loss.mean()
    return loss.sum()


if __name__ == "__main__":
    key = jax.random.PRNGKey(0)
    k1, k2 = jax.random.split(key)

    ok = True

    # 1) Small NCHW-like shape: batch=2, channels=4, spatial=16x16 (n % 128 == 0,
    #    zero-copy path, single full block).
    shape = (2, 4, 16, 16)
    x = jax.random.normal(k1, shape, dtype=jnp.float32)
    y01 = jax.random.bernoulli(k2, 0.5, shape).astype(jnp.float32)
    for y_inf, red in [(0, "mean"), (0, "sum"), (-1, "mean"), (-1, "sum"),
                       (0, "none"), (-1, "none")]:
        tgt = y01 if y_inf == 0 else (y01 * 2.0 - 1.0)
        got = jax.block_until_ready(
            binary_hinge_loss(x, tgt, y_infimum=y_inf, reduction=red))
        want = _reference(x, tgt, y_inf, red)
        if not jnp.allclose(got, want, rtol=1e-5, atol=1e-5):
            ok = False

    # 2) Ragged shape: exercises the <128-element tail pad + masked partial block.
    shape2 = (2, 3, 7, 9)
    x2 = jax.random.normal(k1, shape2, dtype=jnp.float32)
    y2 = jax.random.bernoulli(k2, 0.5, shape2).astype(jnp.float32)
    for red in ("mean", "sum", "none"):
        got = jax.block_until_ready(
            binary_hinge_loss(x2, y2, y_infimum=0, reduction=red))
        want = _reference(x2, y2, 0, red)
        if not jnp.allclose(got, want, rtol=1e-5, atol=1e-5):
            ok = False

    # 3) Multi-block accumulation (forced small block_rows): all-full blocks, and
    #    a ragged case whose final block is partial.
    x3 = jax.random.normal(k1, (2, 4, 32, 32), dtype=jnp.float32)
    y3 = jax.random.bernoulli(k2, 0.5, (2, 4, 32, 32)).astype(jnp.float32)
    x4 = jax.random.normal(k1, (3, 1000), dtype=jnp.float32)
    y4 = jax.random.bernoulli(k2, 0.5, (3, 1000)).astype(jnp.float32)
    for (xa, ya) in ((x3, y3), (x4, y4)):
        for red in ("mean", "sum", "none"):
            got = jax.block_until_ready(
                binary_hinge_loss(xa, ya, y_infimum=0, reduction=red,
                                  block_rows=16))
            want = _reference(xa, ya, 0, red)
            if not jnp.allclose(got, want, rtol=1e-5, atol=1e-5):
                ok = False

    # 4) bf16 inputs: native-dtype streaming (16-sublane packing), f32 math inside.
    xb = x.astype(jnp.bfloat16)
    yb = y01.astype(jnp.bfloat16)
    for red in ("mean", "sum", "none"):
        got = jax.block_until_ready(
            binary_hinge_loss(xb, yb, y_infimum=0, reduction=red))
        want = _reference(xb, yb, 0, red)
        if not jnp.allclose(jnp.asarray(got, jnp.float32), want,
                            rtol=1e-2, atol=1e-2):
            ok = False

    print("KERNEL_OK" if ok else "KERNEL_MISMATCH")
</pallas_src>

<mosaic_0001>
module attributes {stable_mosaic.version = 11 : i64} {
  func.func @_hinge_sum_kernel(%arg0: i32, %arg1: i32, %arg2: memref<16x128xf32, #tpu.memory_space<vmem>>, %arg3: memref<16x128xf32, #tpu.memory_space<vmem>>, %arg4: memref<1x8x128xf32, #tpu.memory_space<vmem>>) attributes {dimension_semantics = [#tpu.dimension_semantics<arbitrary>, #tpu.dimension_semantics<arbitrary>], iteration_bounds = array<i64: 1, 1>, scalar_prefetch = 0 : i64, scratch_operands = 0 : i64, tpu.core_type = #tpu.core_type<tc>, window_params = [{transform_indices = @transform_0, window_bounds = array<i64: 16, 128>}, {transform_indices = @transform_1, window_bounds = array<i64: 16, 128>}, {transform_indices = @transform_2, window_bounds = array<i64: 1, 8, 128>}]} {
    %c0_i32 = arith.constant 0 : i32
    %0 = arith.cmpi eq, %arg1, %c0_i32 : i32
    %1 = arith.extui %0 : i1 to i32
    %c0_i32_0 = arith.constant 0 : i32
    %2 = arith.cmpi ne, %1, %c0_i32_0 : i32
    scf.if %2 {
      %cst_12 = arith.constant 0.000000e+00 : f32
      %24 = vector.broadcast %cst_12 : f32 to vector<1x8x128xf32>
      %c0_13 = arith.constant 0 : index
      %c0_14 = arith.constant 0 : index
      %c0_15 = arith.constant 0 : index
      %25 = vector.load %arg4[%c0_13, %c0_14, %c0_15] : memref<1x8x128xf32, #tpu.memory_space<vmem>>, vector<1x8x128xf32>
      tpu.vector_store %arg4[%c0_13, %c0_14, %c0_15], %24 {strides = array<i32>} : memref<1x8x128xf32, #tpu.memory_space<vmem>>, vector<1x8x128xf32>,
    } else {
    }
    %c0 = arith.constant 0 : index
    %c0_1 = arith.constant 0 : index
    %3 = vector.load %arg2[%c0, %c0_1] : memref<16x128xf32, #tpu.memory_space<vmem>>, vector<16x128xf32>
    %c0_2 = arith.constant 0 : index
    %c0_3 = arith.constant 0 : index
    %4 = vector.load %arg3[%c0_2, %c0_3] : memref<16x128xf32, #tpu.memory_space<vmem>>, vector<16x128xf32>
    %cst = arith.constant 2.000000e+00 : f32
    %5 = vector.broadcast %cst : f32 to vector<16x128xf32>
    %6 = arith.mulf %4, %5 : vector<16x128xf32>
    %cst_4 = arith.constant 1.000000e+00 : f32
    %7 = vector.broadcast %cst_4 : f32 to vector<16x128xf32>
    %8 = arith.subf %6, %7 : vector<16x128xf32>
    %9 = arith.mulf %8, %3 : vector<16x128xf32>
    %cst_5 = arith.constant 1.000000e+00 : f32
    %10 = vector.broadcast %cst_5 : f32 to vector<16x128xf32>
    %11 = arith.subf %10, %9 : vector<16x128xf32>
    %cst_6 = arith.constant 0.000000e+00 : f32
    %12 = vector.broadcast %cst_6 : f32 to vector<16x128xf32>
    %13 = arith.maximumf %12, %11 : vector<16x128xf32>
    %c1_i32 = arith.constant 1 : i32
    %14 = arith.muli %arg0, %c1_i32 : i32
    %15 = arith.addi %14, %arg1 : i32
    %c16_i32 = arith.constant 16 : i32
    %16 = arith.muli %15, %c16_i32 : i32
    %c16_i32_7 = arith.constant 16 : i32
    %17 = arith.subi %c16_i32_7, %16 : i32
    %c16_i32_8 = arith.constant 16 : i32
    %18 = arith.cmpi sge, %17, %c16_i32_8 : i32
    %19 = arith.extui %18 : i1 to i32
    %c0_i32_9 = arith.constant 0 : i32
    %20 = arith.cmpi ne, %19, %c0_i32_9 : i32
    scf.if %20 {
      %c0_12 = arith.constant 0 : index
      %c0_13 = arith.constant 0 : index
      %c0_14 = arith.constant 0 : index
      %24 = vector.load %arg4[%c0_12, %c0_13, %c0_14] : memref<1x8x128xf32, #tpu.memory_space<vmem>>, vector<1x8x128xf32>
      %25 = vector.shape_cast %13 : vector<16x128xf32> to vector<2x8x128xf32>
      %cst_15 = arith.constant dense<0.000000e+00> : vector<8x128xf32>
      %26 = vector.multi_reduction <add>, %25, %cst_15 [0] : vector<2x8x128xf32> to vector<8x128xf32>
      %27 = vector.shape_cast %26 : vector<8x128xf32> to vector<1x8x128xf32>
      %28 = arith.addf %24, %27 : vector<1x8x128xf32>
      %c0_16 = arith.constant 0 : index
      %c0_17 = arith.constant 0 : index
      %c0_18 = arith.constant 0 : index
      %29 = vector.load %arg4[%c0_16, %c0_17, %c0_18] : memref<1x8x128xf32, #tpu.memory_space<vmem>>, vector<1x8x128xf32>
      tpu.vector_store %arg4[%c0_16, %c0_17, %c0_18], %28 {strides = array<i32>} : memref<1x8x128xf32, #tpu.memory_space<vmem>>, vector<1x8x128xf32>,
    } else {
    }
    %c16_i32_10 = arith.constant 16 : i32
    %21 = arith.cmpi slt, %17, %c16_i32_10 : i32
    %22 = arith.extui %21 : i1 to i32
    %c0_i32_11 = arith.constant 0 : i32
    %23 = arith.cmpi ne, %22, %c0_i32_11 : i32
    scf.if %23 {
      %24 = tpu.iota {dimensions = array<i32: 0>} : vector<16x128xi32>
      %25 = vector.broadcast %17 : i32 to vector<16x128xi32>
      %26 = arith.cmpi slt, %24, %25 : vector<16x128xi32>
      %cst_12 = arith.constant 0.000000e+00 : f32
      %27 = vector.broadcast %cst_12 : f32 to vector<16x128xf32>
      %28 = arith.select %26, %13, %27 : vector<16x128xi1>, vector<16x128xf32>
      %c0_13 = arith.constant 0 : index
      %c0_14 = arith.constant 0 : index
      %c0_15 = arith.constant 0 : index
      %29 = vector.load %arg4[%c0_13, %c0_14, %c0_15] : memref<1x8x128xf32, #tpu.memory_space<vmem>>, vector<1x8x128xf32>
      %30 = vector.shape_cast %28 : vector<16x128xf32> to vector<2x8x128xf32>
      %cst_16 = arith.constant dense<0.000000e+00> : vector<8x128xf32>
      %31 = vector.multi_reduction <add>, %30, %cst_16 [0] : vector<2x8x128xf32> to vector<8x128xf32>
      %32 = vector.shape_cast %31 : vector<8x128xf32> to vector<1x8x128xf32>
      %33 = arith.addf %29, %32 : vector<1x8x128xf32>
      %c0_17 = arith.constant 0 : index
      %c0_18 = arith.constant 0 : index
      %c0_19 = arith.constant 0 : index
      %34 = vector.load %arg4[%c0_17, %c0_18, %c0_19] : memref<1x8x128xf32, #tpu.memory_space<vmem>>, vector<1x8x128xf32>
      tpu.vector_store %arg4[%c0_17, %c0_18, %c0_19], %33 {strides = array<i32>} : memref<1x8x128xf32, #tpu.memory_space<vmem>>, vector<1x8x128xf32>,
    } else {
    }
    return
  }
  func.func @transform_0(%arg0: i32, %arg1: i32) -> (i32, i32) {
    %c1_i32 = arith.constant 1 : i32
    %0 = arith.muli %arg0, %c1_i32 : i32
    %1 = arith.addi %0, %arg1 : i32
    %c0_i32 = arith.constant 0 : i32
    %c0_i32_0 = arith.constant 0 : i32
    return %1, %c0_i32 : i32, i32
  }
  func.func @transform_1(%arg0: i32, %arg1: i32) -> (i32, i32) {
    %c1_i32 = arith.constant 1 : i32
    %0 = arith.muli %arg0, %c1_i32 : i32
    %1 = arith.addi %0, %arg1 : i32
    %c0_i32 = arith.constant 0 : i32
    %c0_i32_0 = arith.constant 0 : i32
    return %1, %c0_i32 : i32, i32
  }
  func.func @transform_2(%arg0: i32, %arg1: i32) -> (i32, i32, i32) {
    %c0_i32 = arith.constant 0 : i32
    %c0_i32_0 = arith.constant 0 : i32
    %c0_i32_1 = arith.constant 0 : i32
    return %arg0, %c0_i32, %c0_i32_0 : i32, i32, i32
  }
}

</mosaic_0001>

<llo_original>
// kernel: tpu_custom_call.1
$region0: #{tpu_custom_call.1}
  #allocation0 [shape = 'u32[]', space=smem, size = 0x4, offset = 0x4, fixed_abs, tag = 'smem constant byte address 0x4 - core index']
  #allocation1 [shape = 'u32[144,128]{1,0:T(1,128)}', space=vmem, size = 0x12000, scoped, tag = 'internal scratch']
  %s0 = inlined_call_operand.hbm [shape: f32[16,128], index: 0, kind: input, shape index: {}]
  %s1 = inlined_call_operand.hbm [shape: f32[16,128], index: 1, kind: input, shape index: {}]
  %s2 = inlined_call_operand.hbm [shape: f32[1,8,128], index: 2, kind: output, shape index: {}]
  %s3 = sld [smem:[#allocation0]]
  $region38: #{tpu_custom_call.1} parent=0
    _
  %s5 = ssub.s32 1, %s3
  %s6 = scalar_select 0, %s5, %s3
  $region1: #{tpu_custom_call.1} parent=0
    #allocation2 [shape = 'u8[8192]{0}', space=vmem, size = 0x2000, scoped, tag = 'input window, operand 0, single buffered']
    #allocation3 [shape = 's32[1]{0}', space=sflag, size = 0x4, scoped, tag = 'scoped memory for tpu_custom_call.1']
    #allocation4 [shape = 's32[1]{0}', space=sflag, size = 0x4, scoped, tag = 'scoped memory for tpu_custom_call.1']
    #allocation5 [shape = 'u8[8192]{0}', space=vmem, size = 0x2000, scoped, tag = 'input window, operand 1, single buffered']
    #allocation6 [shape = 's32[1]{0}', space=sflag, size = 0x4, scoped, tag = 'scoped memory for tpu_custom_call.1']
    #allocation7 [shape = 'u8[4096]{0}', space=vmem, size = 0x1000, scoped, tag = 'output window, operand 0, single buffered']
    %7 = vsyncpa [#allocation3], 0
    %8 = vsyncpa [#allocation6], 0
    %9 = vsyncpa [#allocation4], 0
    // Predicated region
    $region2: #{tpu_custom_call.1} parent=1 // pred_check
      _
    $region3: #{tpu_custom_call.1} parent=1 // pred_check_branch
      %11 = sbr.rel (0) target = $region5
    $region4: #{tpu_custom_call.1} parent=1 // pred_region
      %s12 = sadd.s32 0, 0
      %s13 = smul.u32 2, %s12
      %s15 = ssub.s32 256, 256
      %16 = vsyncadd [#allocation3], %s15
      %s17 = smul.addr %s13, 128
      %s18 = scalar_lea.hbm %s0, %s17
      %s19 = sshll.u32 [#allocation2], 4
      %s20 = int_to_ptr.vmem [resolvable:$true] %s19
      %25 = dma.hbm_to_vmem [thread:$0]  %s18, 256, %s20, [#allocation3], 128, 128, 8
    $region5: #{tpu_custom_call.1} parent=1 // pred_fallthru
      _
    // Predicated region
    $region6: #{tpu_custom_call.1} parent=1 // pred_check
      _
    $region7: #{tpu_custom_call.1} parent=1 // pred_check_branch
      %27 = sbr.rel (0) target = $region9
    $region8: #{tpu_custom_call.1} parent=1 // pred_region
      %s28 = sadd.s32 0, 0
      %s29 = smul.u32 2, %s28
      %s31 = ssub.s32 256, 256
      %32 = vsyncadd [#allocation6], %s31
      %s33 = smul.addr %s29, 128
      %s34 = scalar_lea.hbm %s1, %s33
      %s35 = sshll.u32 [#allocation5], 4
      %s36 = int_to_ptr.vmem [resolvable:$true] %s35
      %41 = dma.hbm_to_vmem [thread:$0]  %s34, 256, %s36, [#allocation6], 128, 128, 8
    $region9: #{tpu_custom_call.1} parent=1 // pred_fallthru
      _
    // Predicated region
    $region10: #{tpu_custom_call.1} parent=1 // pred_check
      _
    $region11: #{tpu_custom_call.1} parent=1 // pred_check_branch
      %43 = sbr.rel (0) target = $region13
    $region12: #{tpu_custom_call.1} parent=1 // pred_region
      %44 = dma.done [#allocation3], 256
    $region13: #{tpu_custom_call.1} parent=1 // pred_fallthru
      _
    // Predicated region
    $region14: #{tpu_custom_call.1} parent=1 // pred_check
      _
    $region15: #{tpu_custom_call.1} parent=1 // pred_check_branch
      %46 = sbr.rel (0) target = $region17
    $region16: #{tpu_custom_call.1} parent=1 // pred_region
      %47 = dma.done [#allocation6], 256
    $region17: #{tpu_custom_call.1} parent=1 // pred_fallthru
      _
    %s48 = sadd.s32 0, 0
    %s49 = smul.u32 2, %s48
    %s50 = sadd.s32 0, 0
    %s51 = smul.u32 2, %s50
    %p52 = scmp.eq.s32.totalorder 0, 0
    // Predicated region
    $region18: #{tpu_custom_call.1} parent=1 // pred_check
      %p53 = pneg %p52
    $region19: #{tpu_custom_call.1} parent=1 // pred_check_branch
      %55 = sbr.rel (%p53) target = $region21
    $region20: #{tpu_custom_call.1} parent=1 // pred_region
      %56 = vst [vmem:[#allocation7] sm:$0xff] 0.0
    $region21: #{tpu_custom_call.1} parent=1 // pred_fallthru
      _
    %v57 = vld [vmem:[#allocation2] sm:$0xff]
    %v58 = vld [vmem:[#allocation2 + $0x8] sm:$0xff]
    %v59 = vld [vmem:[#allocation5] sm:$0xff]
    %v60 = vld [vmem:[#allocation5 + $0x8] sm:$0xff]
    %v61 = vmul.f32 %v59, 2.0
    %v62 = vmul.f32 %v60, 2.0
    %v63 = vsub.f32 %v61, 1.0
    %v64 = vsub.f32 %v62, 1.0
    %v65 = vmul.f32 %v63, %v57
    %v66 = vmul.f32 %v64, %v58
    %v67 = vsub.f32 1.0, %v65
    %v68 = vsub.f32 1.0, %v66
    %v69 = vmax.f32 %v67, 0.0
    %v70 = vmax.f32 %v68, 0.0
    %s71 = sadd.s32 0, 0
    %s72 = smul.u32 %s71, 16
    %s73 = ssub.s32 16, %s72
    %p74 = scmp.ge.s32.totalorder %s73, 16
    // Predicated region
    $region22: #{tpu_custom_call.1} parent=1 // pred_check
      %p75 = pneg %p74
    $region23: #{tpu_custom_call.1} parent=1 // pred_check_branch
      %77 = sbr.rel (%p75) target = $region25
    $region24: #{tpu_custom_call.1} parent=1 // pred_region
      %v78 = vld [vmem:[#allocation7] sm:$0xff]
      %v79 = vadd.f32 %v69, %v70
      %v80 = vadd.f32 %v78, %v79
      %81 = vst [vmem:[#allocation7] sm:$0xff] %v80
    $region25: #{tpu_custom_call.1} parent=1 // pred_fallthru
      _
    %p82 = scmp.lt.s32.totalorder %s73, 16
    // Predicated region
    $region26: #{tpu_custom_call.1} parent=1 // pred_check
      %p83 = pneg %p82
    $region27: #{tpu_custom_call.1} parent=1 // pred_check_branch
      %85 = sbr.rel (%p83) target = $region29
    $region28: #{tpu_custom_call.1} parent=1 // pred_region
      %v86 = vlaneseq
      %v87 = vshrl.u32 %v86, 7
      %v88 = vadd.s32 %v87, 8
      %v89 = vstv %s73
      %vm90 = vcmp.lt.s32.totalorder %v87, %v89
      %vm91 = vcmp.lt.s32.totalorder %v88, %v89
      %v92 = vsel %vm90, %v69, 0.0
      %v93 = vsel %vm91, %v70, 0.0
      %v94 = vld [vmem:[#allocation7] sm:$0xff]
      %v95 = vadd.f32 %v92, %v93
      %v96 = vadd.f32 %v94, %v95
      %97 = vst [vmem:[#allocation7] sm:$0xff] %v96
    $region29: #{tpu_custom_call.1} parent=1 // pred_fallthru
      _
    // Predicated region
    $region30: #{tpu_custom_call.1} parent=1 // pred_check
      _
    $region31: #{tpu_custom_call.1} parent=1 // pred_check_branch
      %99 = sbr.rel (0) target = $region33
    $region32: #{tpu_custom_call.1} parent=1 // pred_region
      %s101 = ssub.s32 128, 128
      %102 = vsyncadd [#allocation4], %s101
      %s104 = sshll.u32 [#allocation7], 4
      %s105 = int_to_ptr.vmem [resolvable:$true] %s104
      %107 = dma.vmem_to_hbm [thread:$0]  %s105, 128, %s2, [#allocation4]
    $region33: #{tpu_custom_call.1} parent=1 // pred_fallthru
      _
    // Predicated region
    $region34: #{tpu_custom_call.1} parent=1 // pred_check
      _
    $region35: #{tpu_custom_call.1} parent=1 // pred_check_branch
      %109 = sbr.rel (0) target = $region37
    $region36: #{tpu_custom_call.1} parent=1 // pred_region
      %110 = dma.done [#allocation4], 128
    $region37: #{tpu_custom_call.1} parent=1 // pred_fallthru
      _
    %111 = vsyncpa [#allocation3], 1
    %112 = vsyncpa [#allocation6], 1
    %113 = vsyncpa [#allocation4], 1

</llo_original>
